<compile_context>
chip_gen: v6e
topology: v6e:2x2x1
jax: 0.10.0
libtpu: 0.0.40
codegen_flags: <defaults>
</compile_context>

<pallas_src>
import functools
import math

import jax
import jax.numpy as jnp
from jax.experimental import pallas as pl
from jax.experimental.pallas import tpu as pltpu


def _fold_to_128(v):
    """Lane-fold a (C, W) tile to (C, 128) with a pairwise tree of VPU adds.

    W must be a power-of-two multiple of 128 (guaranteed by tile selection).
    """
    w = v.shape[1]
    while w > 128:
        h = w // 2
        v = v[:, :h] + v[:, h:]
        w = h
    return v


def _dice_kernel(x_ref, t_ref, isum_ref, dsum_ref, *, hw, tm, nj_per_split, needs_mask):
    j = pl.program_id(2)

    @pl.when(j == 0)
    def _init():
        isum_ref[...] = jnp.zeros_like(isum_ref)
        dsum_ref[...] = jnp.zeros_like(dsum_ref)

    x = x_ref[...].astype(jnp.float32)   # (C, TM)
    t = t_ref[...].astype(jnp.float32)   # (C, TM)

    # Softmax over the channel axis (axis 0), per column.
    # One exact reciprocal per column (1, TM) instead of C*TM per-element divides.
    mx = jnp.max(x, axis=0, keepdims=True)
    e = jnp.exp(x - mx)
    inv = 1.0 / jnp.sum(e, axis=0, keepdims=True)
    p = e * inv

    pt = p * t
    pd = p + t

    def _accum(a, b):
        isum_ref[...] += _fold_to_128(a)
        dsum_ref[...] += _fold_to_128(b)

    if needs_mask:
        gj = pl.program_id(1) * nj_per_split + j     # global block index along HW
        col0 = gj * tm

        @pl.when(col0 + tm <= hw)
        def _full():
            _accum(pt, pd)

        @pl.when(col0 + tm > hw)
        def _ragged():
            # Select (not multiply): OOB columns may hold NaN/inf after softmax.
            col = jax.lax.broadcasted_iota(jnp.int32, (1, tm), 1) + col0
            valid = col < hw
            _accum(jnp.where(valid, pt, 0.0), jnp.where(valid, pd, 0.0))
    else:
        _accum(pt, pd)


def _pad_rows(rows, dtype):
    """Sublane-padded row count for a (rows, lanes) VMEM tile of `dtype`."""
    pack = max(1, 4 // jnp.dtype(dtype).itemsize)
    mult = 8 * pack
    return ((rows + mult - 1) // mult) * mult


def _pow2_ceil(v):
    return 1 << max(0, (v - 1).bit_length())


def _pow2_floor(v):
    return 1 << (v.bit_length() - 1)


def dice_loss(output, target, *, tm=65536, hw_splits=2):
    assert output.shape == target.shape, "'input' and 'target' must have the same shape"
    n, c = output.shape[0], output.shape[1]
    hw = int(math.prod(output.shape[2:])) if output.ndim > 2 else 1

    # Free reshape (no data movement): (N, C, *spatial) -> (N, C, HW).
    x3 = output.reshape(n, c, hw)
    t3 = target.reshape(n, c, hw)

    # --- Tile selection (sublane-padding-aware VMEM budget, power-of-2 x 128) ---
    xi = jnp.dtype(x3.dtype).itemsize
    ti = jnp.dtype(t3.dtype).itemsize
    bytes_per_col = _pad_rows(c, x3.dtype) * xi + _pad_rows(c, t3.dtype) * ti
    in_budget = 28 * 1024 * 1024                      # double-buffered inputs budget
    nblk_cap = max(1, in_budget // (2 * bytes_per_col * 128))
    nblk_hw = pl.cdiv(hw, 128)
    nblk_want = max(1, tm // 128)

    nblk = min(nblk_want, nblk_cap, _pow2_ceil(nblk_hw))
    nblk = max(1, _pow2_floor(nblk))
    tm_eff = nblk * 128

    nj_total = pl.cdiv(hw, tm_eff)
    n_split_eff = max(1, min(hw_splits, nj_total))    # extra parallel axis for v7x 2 TCs
    nj_per_split = pl.cdiv(nj_total, n_split_eff)
    needs_mask = (hw % tm_eff != 0) or (n_split_eff * nj_per_split != nj_total)

    # Actual VMEM footprint (padding-aware) + margin; clamp to a v7x-safe limit.
    in_bytes = 2 * bytes_per_col * tm_eff             # 2x double-buffered input tiles
    out_bytes = 2 * 2 * _pad_rows(c, jnp.float32) * 128 * 4
    footprint = in_bytes + out_bytes
    vmem_limit = int(min(max(footprint + 4 * 1024 * 1024, 32 * 1024 * 1024),
                         40 * 1024 * 1024))

    if n_split_eff * nj_per_split == nj_total:
        def in_idx(b, s, j):
            return (b, 0, s * nj_per_split + j)
    else:
        last = nj_total - 1

        def in_idx(b, s, j):
            return (b, 0, jnp.minimum(s * nj_per_split + j, last))

    kernel = functools.partial(_dice_kernel, hw=hw, tm=tm_eff,
                               nj_per_split=nj_per_split, needs_mask=needs_mask)

    isum, dsum = pl.pallas_call(
        kernel,
        out_shape=(
            jax.ShapeDtypeStruct((n, n_split_eff, c, 128), jnp.float32),
            jax.ShapeDtypeStruct((n, n_split_eff, c, 128), jnp.float32),
        ),
        grid_spec=pltpu.PrefetchScalarGridSpec(
            num_scalar_prefetch=0,
            grid=(n, n_split_eff, nj_per_split),
            in_specs=[
                pl.BlockSpec((pl.Squeezed(), c, tm_eff), in_idx),
                pl.BlockSpec((pl.Squeezed(), c, tm_eff), in_idx),
            ],
            out_specs=(
                pl.BlockSpec((pl.Squeezed(), pl.Squeezed(), c, 128),
                             lambda b, s, j: (b, s, 0, 0)),
                pl.BlockSpec((pl.Squeezed(), pl.Squeezed(), c, 128),
                             lambda b, s, j: (b, s, 0, 0)),
            ),
        ),
        compiler_params=pltpu.CompilerParams(
            dimension_semantics=("parallel", "parallel", "arbitrary"),
            vmem_limit_bytes=vmem_limit,
        ),
    )(x3, t3)

    # Tiny final combine in plain JAX (sums the lane/split/batch partials).
    intersect = jnp.sum(isum, axis=(0, 1, 3))       # (C,)
    denominator = jnp.sum(dsum, axis=(0, 1, 3))     # (C,)
    dice = intersect / denominator                  # no epsilon: matches the PyTorch forward
    return 1.0 - jnp.mean(dice)


def _flatten_channel_first(x):
    """(N, C, *spatial) -> (C, N * prod(spatial)), matching torch `flatten`."""
    c = x.shape[1]
    axis_order = (1, 0) + tuple(range(2, x.ndim))
    return jnp.transpose(x, axis_order).reshape(c, -1)


def dice_loss_ref(output, target):
    """Pure-JAX reference matching the PyTorch module exactly."""
    p = jax.nn.softmax(output, axis=1)
    p2 = _flatten_channel_first(p)
    t2 = _flatten_channel_first(target)
    intersect = jnp.sum(p2 * t2, axis=-1)
    denominator = jnp.sum(p2 + t2, axis=-1)
    return 1.0 - jnp.mean(intersect / denominator)


if __name__ == "__main__":
    key = jax.random.PRNGKey(0)
    k1, k2 = jax.random.split(key)
    # NCHW inputs, same shape for output and target
    x = jax.random.normal(k1, (2, 4, 16, 16), dtype=jnp.float32)
    t = jax.random.normal(k2, (2, 4, 16, 16), dtype=jnp.float32)

    loss = dice_loss(x, t)
    jax.block_until_ready(loss)

    ref = dice_loss_ref(x, t)
    assert jnp.allclose(loss, ref, atol=1e-5, rtol=1e-5), (loss, ref)
    print("KERNEL_OK")
</pallas_src>

<mosaic_0001>
module attributes {stable_mosaic.version = 11 : i64} {
  func.func @_dice_kernel(%arg0: i32, %arg1: i32, %arg2: i32, %arg3: memref<1x4x256xf32, #tpu.memory_space<vmem>>, %arg4: memref<1x4x256xf32, #tpu.memory_space<vmem>>, %arg5: memref<1x1x4x128xf32, #tpu.memory_space<vmem>>, %arg6: memref<1x1x4x128xf32, #tpu.memory_space<vmem>>) attributes {dimension_semantics = [#tpu.dimension_semantics<parallel>, #tpu.dimension_semantics<parallel>, #tpu.dimension_semantics<arbitrary>], iteration_bounds = array<i64: 2, 1, 1>, scalar_prefetch = 0 : i64, scratch_operands = 0 : i64, tpu.core_type = #tpu.core_type<tc>, window_params = [{transform_indices = @transform_0, window_bounds = array<i64: 1, 4, 256>}, {transform_indices = @transform_1, window_bounds = array<i64: 1, 4, 256>}, {transform_indices = @transform_2, window_bounds = array<i64: 1, 1, 4, 128>}, {transform_indices = @transform_3, window_bounds = array<i64: 1, 1, 4, 128>}]} {
    %c0_i32 = arith.constant 0 : i32
    %0 = arith.cmpi eq, %arg2, %c0_i32 : i32
    %1 = arith.extui %0 : i1 to i32
    %c0_i32_0 = arith.constant 0 : i32
    %2 = arith.cmpi ne, %1, %c0_i32_0 : i32
    scf.if %2 {
      %cst_24 = arith.constant 0.000000e+00 : f32
      %38 = vector.broadcast %cst_24 : f32 to vector<4x128xf32>
      %c0_25 = arith.constant 0 : index
      %c0_26 = arith.constant 0 : index
      %c0_27 = arith.constant 0 : index
      %c0_28 = arith.constant 0 : index
      %39 = vector.load %arg5[%c0_25, %c0_26, %c0_27, %c0_28] : memref<1x1x4x128xf32, #tpu.memory_space<vmem>>, vector<1x1x4x128xf32>
      %40 = vector.shape_cast %39 : vector<1x1x4x128xf32> to vector<4x128xf32>
      %41 = vector.shape_cast %38 : vector<4x128xf32> to vector<1x1x4x128xf32>
      tpu.vector_store %arg5[%c0_25, %c0_26, %c0_27, %c0_28], %41 {strides = array<i32>} : memref<1x1x4x128xf32, #tpu.memory_space<vmem>>, vector<1x1x4x128xf32>,
      %cst_29 = arith.constant 0.000000e+00 : f32
      %42 = vector.broadcast %cst_29 : f32 to vector<4x128xf32>
      %c0_30 = arith.constant 0 : index
      %c0_31 = arith.constant 0 : index
      %c0_32 = arith.constant 0 : index
      %c0_33 = arith.constant 0 : index
      %43 = vector.load %arg6[%c0_30, %c0_31, %c0_32, %c0_33] : memref<1x1x4x128xf32, #tpu.memory_space<vmem>>, vector<1x1x4x128xf32>
      %44 = vector.shape_cast %43 : vector<1x1x4x128xf32> to vector<4x128xf32>
      %45 = vector.shape_cast %42 : vector<4x128xf32> to vector<1x1x4x128xf32>
      tpu.vector_store %arg6[%c0_30, %c0_31, %c0_32, %c0_33], %45 {strides = array<i32>} : memref<1x1x4x128xf32, #tpu.memory_space<vmem>>, vector<1x1x4x128xf32>,
    } else {
    }
    %c0 = arith.constant 0 : index
    %c0_1 = arith.constant 0 : index
    %c0_2 = arith.constant 0 : index
    %3 = vector.load %arg3[%c0, %c0_1, %c0_2] : memref<1x4x256xf32, #tpu.memory_space<vmem>>, vector<1x4x256xf32>
    %4 = vector.shape_cast %3 : vector<1x4x256xf32> to vector<4x256xf32>
    %c0_3 = arith.constant 0 : index
    %c0_4 = arith.constant 0 : index
    %c0_5 = arith.constant 0 : index
    %5 = vector.load %arg4[%c0_3, %c0_4, %c0_5] : memref<1x4x256xf32, #tpu.memory_space<vmem>>, vector<1x4x256xf32>
    %6 = vector.shape_cast %5 : vector<1x4x256xf32> to vector<4x256xf32>
    %cst = arith.constant dense<0xFF800000> : vector<256xf32>
    %7 = vector.multi_reduction <maximumf>, %4, %cst [0] : vector<4x256xf32> to vector<256xf32>
    %8 = vector.shape_cast %7 : vector<256xf32> to vector<1x256xf32>
    %9 = vector.broadcast %8 : vector<1x256xf32> to vector<4x256xf32>
    %10 = arith.subf %4, %9 : vector<4x256xf32>
    %11 = math.exp %10 : vector<4x256xf32>
    %cst_6 = arith.constant dense<0.000000e+00> : vector<256xf32>
    %12 = vector.multi_reduction <add>, %11, %cst_6 [0] : vector<4x256xf32> to vector<256xf32>
    %13 = vector.shape_cast %12 : vector<256xf32> to vector<1x256xf32>
    %cst_7 = arith.constant 1.000000e+00 : f32
    %14 = vector.broadcast %cst_7 : f32 to vector<1x256xf32>
    %15 = arith.divf %14, %13 : vector<1x256xf32>
    %16 = vector.broadcast %15 : vector<1x256xf32> to vector<4x256xf32>
    %17 = arith.mulf %11, %16 : vector<4x256xf32>
    %18 = arith.mulf %17, %6 : vector<4x256xf32>
    %19 = arith.addf %17, %6 : vector<4x256xf32>
    %c0_8 = arith.constant 0 : index
    %c0_9 = arith.constant 0 : index
    %c0_10 = arith.constant 0 : index
    %c0_11 = arith.constant 0 : index
    %20 = vector.load %arg5[%c0_8, %c0_9, %c0_10, %c0_11] : memref<1x1x4x128xf32, #tpu.memory_space<vmem>>, vector<1x1x4x128xf32>
    %21 = vector.shape_cast %20 : vector<1x1x4x128xf32> to vector<4x128xf32>
    %22 = vector.extract_strided_slice %18 {offsets = [0, 0], sizes = [4, 128], strides = [1, 1]} : vector<4x256xf32> to vector<4x128xf32>
    %23 = vector.extract_strided_slice %18 {offsets = [0, 128], sizes = [4, 128], strides = [1, 1]} : vector<4x256xf32> to vector<4x128xf32>
    %24 = arith.addf %22, %23 : vector<4x128xf32>
    %25 = arith.addf %21, %24 : vector<4x128xf32>
    %c0_12 = arith.constant 0 : index
    %c0_13 = arith.constant 0 : index
    %c0_14 = arith.constant 0 : index
    %c0_15 = arith.constant 0 : index
    %26 = vector.load %arg5[%c0_12, %c0_13, %c0_14, %c0_15] : memref<1x1x4x128xf32, #tpu.memory_space<vmem>>, vector<1x1x4x128xf32>
    %27 = vector.shape_cast %26 : vector<1x1x4x128xf32> to vector<4x128xf32>
    %28 = vector.shape_cast %25 : vector<4x128xf32> to vector<1x1x4x128xf32>
    tpu.vector_store %arg5[%c0_12, %c0_13, %c0_14, %c0_15], %28 {strides = array<i32>} : memref<1x1x4x128xf32, #tpu.memory_space<vmem>>, vector<1x1x4x128xf32>,
    %c0_16 = arith.constant 0 : index
    %c0_17 = arith.constant 0 : index
    %c0_18 = arith.constant 0 : index
    %c0_19 = arith.constant 0 : index
    %29 = vector.load %arg6[%c0_16, %c0_17, %c0_18, %c0_19] : memref<1x1x4x128xf32, #tpu.memory_space<vmem>>, vector<1x1x4x128xf32>
    %30 = vector.shape_cast %29 : vector<1x1x4x128xf32> to vector<4x128xf32>
    %31 = vector.extract_strided_slice %19 {offsets = [0, 0], sizes = [4, 128], strides = [1, 1]} : vector<4x256xf32> to vector<4x128xf32>
    %32 = vector.extract_strided_slice %19 {offsets = [0, 128], sizes = [4, 128], strides = [1, 1]} : vector<4x256xf32> to vector<4x128xf32>
    %33 = arith.addf %31, %32 : vector<4x128xf32>
    %34 = arith.addf %30, %33 : vector<4x128xf32>
    %c0_20 = arith.constant 0 : index
    %c0_21 = arith.constant 0 : index
    %c0_22 = arith.constant 0 : index
    %c0_23 = arith.constant 0 : index
    %35 = vector.load %arg6[%c0_20, %c0_21, %c0_22, %c0_23] : memref<1x1x4x128xf32, #tpu.memory_space<vmem>>, vector<1x1x4x128xf32>
    %36 = vector.shape_cast %35 : vector<1x1x4x128xf32> to vector<4x128xf32>
    %37 = vector.shape_cast %34 : vector<4x128xf32> to vector<1x1x4x128xf32>
    tpu.vector_store %arg6[%c0_20, %c0_21, %c0_22, %c0_23], %37 {strides = array<i32>} : memref<1x1x4x128xf32, #tpu.memory_space<vmem>>, vector<1x1x4x128xf32>,
    return
  }
  func.func @transform_0(%arg0: i32, %arg1: i32, %arg2: i32) -> (i32, i32, i32) {
    %c1_i32 = arith.constant 1 : i32
    %0 = arith.muli %arg1, %c1_i32 : i32
    %1 = arith.addi %0, %arg2 : i32
    %c0_i32 = arith.constant 0 : i32
    %c0_i32_0 = arith.constant 0 : i32
    return %arg0, %c0_i32, %1 : i32, i32, i32
  }
  func.func @transform_1(%arg0: i32, %arg1: i32, %arg2: i32) -> (i32, i32, i32) {
    %c1_i32 = arith.constant 1 : i32
    %0 = arith.muli %arg1, %c1_i32 : i32
    %1 = arith.addi %0, %arg2 : i32
    %c0_i32 = arith.constant 0 : i32
    %c0_i32_0 = arith.constant 0 : i32
    return %arg0, %c0_i32, %1 : i32, i32, i32
  }
  func.func @transform_2(%arg0: i32, %arg1: i32, %arg2: i32) -> (i32, i32, i32, i32) {
    %c0_i32 = arith.constant 0 : i32
    %c0_i32_0 = arith.constant 0 : i32
    %c0_i32_1 = arith.constant 0 : i32
    return %arg0, %arg1, %c0_i32, %c0_i32_0 : i32, i32, i32, i32
  }
  func.func @transform_3(%arg0: i32, %arg1: i32, %arg2: i32) -> (i32, i32, i32, i32) {
    %c0_i32 = arith.constant 0 : i32
    %c0_i32_0 = arith.constant 0 : i32
    %c0_i32_1 = arith.constant 0 : i32
    return %arg0, %arg1, %c0_i32, %c0_i32_0 : i32, i32, i32, i32
  }
}

</mosaic_0001>

<llo_original>
// kernel: tpu_custom_call.1
$region0: #{tpu_custom_call.1}
  #allocation0 [shape = 'u32[]', space=smem, size = 0x4, offset = 0x4, fixed_abs, tag = 'smem constant byte address 0x4 - core index']
  #allocation1 [shape = 'u32[144,128]{1,0:T(1,128)}', space=vmem, size = 0x12000, scoped, tag = 'internal scratch']
  %s0 = inlined_call_operand.hbm [shape: f32[2,4,256], index: 0, kind: input, shape index: {}]
  %s1 = inlined_call_operand.hbm [shape: f32[2,4,256], index: 1, kind: input, shape index: {}]
  %s2 = inlined_call_operand.hbm [shape: f32[2,1,4,128], index: 2, kind: output, shape index: {0}]
  %s3 = inlined_call_operand.hbm [shape: f32[2,1,4,128], index: 3, kind: output, shape index: {1}]
  %4 = xla_tuple %s2, %s3
  %s5 = sld [smem:[#allocation0]]
  $region61: #{tpu_custom_call.1} parent=0
    _
  %s7 = ssub.s32 1, %s5
  %s8 = scalar_select 0, %s7, %s5
  $region1: #{tpu_custom_call.1} parent=0
    #allocation2 [shape = 'u8[8192]{0}', space=vmem, size = 0x2000, scoped, tag = 'input window, operand 0']
    #allocation3 [shape = 's32[2]{0}', space=sflag, size = 0x8, scoped, tag = 'scoped memory for tpu_custom_call.1']
    #allocation4 [shape = 's32[2]{0}', space=sflag, size = 0x8, scoped, tag = 'scoped memory for tpu_custom_call.1']
    #allocation5 [shape = 'u8[8192]{0}', space=vmem, size = 0x2000, scoped, tag = 'input window, operand 1']
    #allocation6 [shape = 's32[2]{0}', space=sflag, size = 0x8, scoped, tag = 'scoped memory for tpu_custom_call.1']
    #allocation7 [shape = 'u8[4096]{0}', space=vmem, size = 0x1000, scoped, tag = 'output window, operand 0']
    #allocation8 [shape = 'u8[4096]{0}', space=vmem, size = 0x1000, scoped, tag = 'output window, operand 1']
    #allocation9 [shape = 's32[2]{0}', space=sflag, size = 0x8, scoped, tag = 'scoped memory for tpu_custom_call.1']
    %9 = vsyncpa [#allocation3], 0
    %s10 = scalar_lea.sflag [#allocation3], 1
    %11 = vsyncpa %s10, 0
    %12 = vsyncpa [#allocation6], 0
    %s13 = scalar_lea.sflag [#allocation6], 1
    %14 = vsyncpa %s13, 0
    %15 = vsyncpa [#allocation4], 0
    %s16 = scalar_lea.sflag [#allocation4], 1
    %17 = vsyncpa %s16, 0
    %18 = vsyncpa [#allocation9], 0
    %s19 = scalar_lea.sflag [#allocation9], 1
    %20 = vsyncpa %s19, 0
    loop: start=0, step=1, limit=4
    $region2: #{tpu_custom_call.1} parent=1 // loop_pre_header
      _
    $region3: #{tpu_custom_call.1} parent=1 // loop_header
      %s22 = sphi 0, %s26
      %p23 = scmp.ge.s32.totalorder %s22, 4
      %s29 = sphi 0, %s48
      %s30 = sphi 0, %s44
      %s31 = sphi 0, %s40
      %s32 = sphi 0, %s29
      %s33 = sphi 0, %s30
      %s34 = sphi 0, %s31
      %s35 = sphi 0, %s32
      %s36 = sphi 0, %s33
      %s37 = sphi 0, %s34
      %s55 = sphi 0, %s57
      %s58 = sphi 0, %s55
      %s59 = sphi 0, %s58
      %s75 = sphi 0, %s59
      %s85 = sphi 0, %s87
      %s88 = sphi 0, %s85
      %s89 = sphi 0, %s88
      %s105 = sphi 0, %s89
      %s113 = sphi 0, %s115
      %s116 = sphi 0, %s113
      %s117 = sphi 0, %s116
      %s133 = sphi 0, %s117
      %s141 = sphi 0, %s143
      %s144 = sphi 0, %s141
      %s145 = sphi 0, %s144
      %s161 = sphi 0, %s145
    $region4: #{tpu_custom_call.1} parent=1 // loop_header_branch
      %25 = sbr.rel (%p23) target = $region8
    $region5: #{tpu_custom_call.1} parent=1 // loop_body
      %s27 = ssub.s32 %s22, 1
      %s28 = ssub.s32 %s22, 2
      %s38 = sadd.s32 1, %s31
      %p39 = scmp.ge.s32.totalorder %s38, 1
      %s40 = scalar_select %p39, 0, %s38
      %s41 = sadd.s32 1, %s30
      %s42 = scalar_select %p39, %s41, %s30
      %p43 = scmp.ge.s32.totalorder %s42, 1
      %s44 = scalar_select %p43, 0, %s42
      %s45 = sadd.s32 1, %s29
      %s46 = scalar_select %p43, %s45, %s29
      %p47 = scmp.ge.s32.totalorder %s46, 2
      %s48 = scalar_select %p47, 0, %s46
      %s49 = sadd.s32 %s30, %s31
      %s50 = sadd.s32 %s44, %s40
      %s51 = ssub.s32 %s29, %s48
      %s52 = ssub.s32 %s49, %s50
      %s53 = sor.u32 %s51, %s52
      %p54 = scmp.eq.s32.totalorder %s53, 0
      %s56 = sadd.s32 %s55, 1
      %s57 = scalar_select %p54, %s55, %s56
      %p60 = pneg %p54
      %p61 = scmp.eq.s32.totalorder %s22, 1
      %p62 = por %p60, %p61
      %p63 = scmp.ne.s32.totalorder %s55, %s58
      %p64 = scmp.eq.s32.totalorder %s22, 0
      %p65 = por %p63, %p64
      %p66 = scmp.ne.s32.totalorder %s55, %s58
      %p67 = scmp.eq.s32.totalorder %s27, 1
      %p68 = por %p66, %p67
      %p69 = scmp.ne.s32.totalorder %s58, %s59
      %p70 = scmp.eq.s32.totalorder %s27, 0
      %p71 = por %p69, %p70
      %p72 = scmp.ne.s32.totalorder %s58, %s59
      %p73 = scmp.eq.s32.totalorder %s28, 1
      %p74 = por %p72, %p73
      %p76 = scmp.ne.s32.totalorder %s59, %s75
      %p77 = scmp.eq.s32.totalorder %s28, 0
      %p78 = por %p76, %p77
      %s79 = sadd.s32 %s30, %s31
      %s80 = sadd.s32 %s44, %s40
      %s81 = ssub.s32 %s29, %s48
      %s82 = ssub.s32 %s79, %s80
      %s83 = sor.u32 %s81, %s82
      %p84 = scmp.eq.s32.totalorder %s83, 0
      %s86 = sadd.s32 %s85, 1
      %s87 = scalar_select %p84, %s85, %s86
      %p90 = pneg %p84
      %p91 = scmp.eq.s32.totalorder %s22, 1
      %p92 = por %p90, %p91
      %p93 = scmp.ne.s32.totalorder %s85, %s88
      %p94 = scmp.eq.s32.totalorder %s22, 0
      %p95 = por %p93, %p94
      %p96 = scmp.ne.s32.totalorder %s85, %s88
      %p97 = scmp.eq.s32.totalorder %s27, 1
      %p98 = por %p96, %p97
      %p99 = scmp.ne.s32.totalorder %s88, %s89
      %p100 = scmp.eq.s32.totalorder %s27, 0
      %p101 = por %p99, %p100
      %p102 = scmp.ne.s32.totalorder %s88, %s89
      %p103 = scmp.eq.s32.totalorder %s28, 1
      %p104 = por %p102, %p103
      %p106 = scmp.ne.s32.totalorder %s89, %s105
      %p107 = scmp.eq.s32.totalorder %s28, 0
      %p108 = por %p106, %p107
      %s109 = ssub.s32 %s29, %s48
      %s110 = ssub.s32 %s30, %s44
      %s111 = sor.u32 %s109, %s110
      %p112 = scmp.eq.s32.totalorder %s111, 0
      %s114 = sadd.s32 %s113, 1
      %s115 = scalar_select %p112, %s113, %s114
      %p118 = pneg %p112
      %p119 = scmp.eq.s32.totalorder %s22, 1
      %p120 = por %p118, %p119
      %p121 = scmp.ne.s32.totalorder %s113, %s116
      %p122 = scmp.eq.s32.totalorder %s22, 0
      %p123 = por %p121, %p122
      %p124 = scmp.ne.s32.totalorder %s113, %s116
      %p125 = scmp.eq.s32.totalorder %s27, 1
      %p126 = por %p124, %p125
      %p127 = scmp.ne.s32.totalorder %s116, %s117
      %p128 = scmp.eq.s32.totalorder %s27, 0
      %p129 = por %p127, %p128
      %p130 = scmp.ne.s32.totalorder %s116, %s117
      %p131 = scmp.eq.s32.totalorder %s28, 1
      %p132 = por %p130, %p131
      %p134 = scmp.ne.s32.totalorder %s117, %s133
      %p135 = scmp.eq.s32.totalorder %s28, 0
      %p136 = por %p134, %p135
      %s137 = ssub.s32 %s29, %s48
      %s138 = ssub.s32 %s30, %s44
      %s139 = sor.u32 %s137, %s138
      %p140 = scmp.eq.s32.totalorder %s139, 0
      %s142 = sadd.s32 %s141, 1
      %s143 = scalar_select %p140, %s141, %s142
      %p146 = pneg %p140
      %p147 = scmp.eq.s32.totalorder %s22, 1
      %p148 = por %p146, %p147
      %p149 = scmp.ne.s32.totalorder %s141, %s144
      %p150 = scmp.eq.s32.totalorder %s22, 0
      %p151 = por %p149, %p150
      %p152 = scmp.ne.s32.totalorder %s141, %s144
      %p153 = scmp.eq.s32.totalorder %s27, 1
      %p154 = por %p152, %p153
      %p155 = scmp.ne.s32.totalorder %s144, %s145
      %p156 = scmp.eq.s32.totalorder %s27, 0
      %p157 = por %p155, %p156
      %p158 = scmp.ne.s32.totalorder %s144, %s145
      %p159 = scmp.eq.s32.totalorder %s28, 1
      %p160 = por %p158, %p159
      %p162 = scmp.ne.s32.totalorder %s145, %s161
      %p163 = scmp.eq.s32.totalorder %s28, 0
      %p164 = por %p162, %p163
      %p165 = scmp.le.s32.totalorder 1, %s22
      %p166 = scmp.lt.s32.totalorder %s22, 3
      %p167 = pnand %p165, %p166
      %p168 = pneg %p167
      // Predicated region
      $region9: #{tpu_custom_call.1} parent=5 // pred_check
        _
      $region10: #{tpu_custom_call.1} parent=5 // pred_check_branch
        %170 = sbr.rel (%p167) target = $region12
      $region11: #{tpu_custom_call.1} parent=5 // pred_region
        %s171 = ssub.s32 %s22, 1
      $region12: #{tpu_custom_call.1} parent=5 // pred_fallthru
        _
      %p172 = scmp.lt.s32.totalorder %s22, 2
      // Predicated region
      $region13: #{tpu_custom_call.1} parent=5 // pred_check
        %p173 = pneg %p172
      $region14: #{tpu_custom_call.1} parent=5 // pred_check_branch
        %175 = sbr.rel (%p173) target = $region16
      $region15: #{tpu_custom_call.1} parent=5 // pred_region
        // Predicated region
        $region17: #{tpu_custom_call.1} parent=15 // pred_check
          %p176 = pneg %p65
        $region18: #{tpu_custom_call.1} parent=15 // pred_check_branch
          %178 = sbr.rel (%p176) target = $region20
        $region19: #{tpu_custom_call.1} parent=15 // pred_region
          %s179 = sand.u32 %s55, 1
          %s180 = scalar_lea.sflag [#allocation3], %s179
          %s181 = sand.u32 %s55, 1
          %s182 = smul.addr %s181, 8
          %s183 = scalar_lea.vmem [#allocation2], %s182
          %s184 = sadd.s32 %s30, %s31
          %s185 = smul.u32 2, %s184
          %s187 = ssub.s32 128, 128
          %188 = vsyncadd %s180, %s187
          %s189 = smul.addr %s29, 2
          %s190 = sadd.s32 %s185, %s189
          %s191 = smul.addr %s190, 64
          %s192 = scalar_lea.hbm %s0, %s191
          %s194 = sshll.u32 %s183, 4
          %s195 = int_to_ptr.vmem [resolvable:$true] %s194
          %197 = dma.hbm_to_vmem [thread:$0]  %s192, 128, %s195, %s180
        $region20: #{tpu_custom_call.1} parent=15 // pred_fallthru
          _
        // Predicated region
        $region21: #{tpu_custom_call.1} parent=15 // pred_check
          %p198 = pneg %p95
        $region22: #{tpu_custom_call.1} parent=15 // pred_check_branch
          %200 = sbr.rel (%p198) target = $region24
        $region23: #{tpu_custom_call.1} parent=15 // pred_region
          %s201 = sand.u32 %s85, 1
          %s202 = scalar_lea.sflag [#allocation6], %s201
          %s203 = sand.u32 %s85, 1
          %s204 = smul.addr %s203, 8
          %s205 = scalar_lea.vmem [#allocation5], %s204
          %s206 = sadd.s32 %s30, %s31
          %s207 = smul.u32 2, %s206
          %s209 = ssub.s32 128, 128
          %210 = vsyncadd %s202, %s209
          %s211 = smul.addr %s29, 2
          %s212 = sadd.s32 %s207, %s211
          %s213 = smul.addr %s212, 64
          %s214 = scalar_lea.hbm %s1, %s213
          %s216 = sshll.u32 %s205, 4
          %s217 = int_to_ptr.vmem [resolvable:$true] %s216
          %219 = dma.hbm_to_vmem [thread:$0]  %s214, 128, %s217, %s202
        $region24: #{tpu_custom_call.1} parent=15 // pred_fallthru
          _
      $region16: #{tpu_custom_call.1} parent=5 // pred_fallthru
        _
      %p220 = scmp.le.s32.totalorder 1, %s22
      %p221 = scmp.lt.s32.totalorder %s22, 3
      %p222 = pnand %p220, %p221
      %p223 = pneg %p222
      // Predicated region
      $region25: #{tpu_custom_call.1} parent=5 // pred_check
        _
      $region26: #{tpu_custom_call.1} parent=5 // pred_check_branch
        %225 = sbr.rel (%p222) target = $region28
      $region27: #{tpu_custom_call.1} parent=5 // pred_region
        %s226 = ssub.s32 %s22, 1
        %s227 = sand.u32 %s58, 1
        %s228 = scalar_lea.sflag [#allocation3], %s227
        %s229 = sand.u32 %s58, 1
        %s230 = smul.addr %s229, 8
        %s231 = scalar_lea.vmem [#allocation2], %s230
        // Predicated region
        $region29: #{tpu_custom_call.1} parent=27 // pred_check
          %p232 = pneg %p71
        $region30: #{tpu_custom_call.1} parent=27 // pred_check_branch
          %234 = sbr.rel (%p232) target = $region32
        $region31: #{tpu_custom_call.1} parent=27 // pred_region
          %235 = dma.done %s228, 128
        $region32: #{tpu_custom_call.1} parent=27 // pred_fallthru
          _
        %s236 = sand.u32 %s88, 1
        %s237 = scalar_lea.sflag [#allocation6], %s236
        %s238 = sand.u32 %s88, 1
        %s239 = smul.addr %s238, 8
        %s240 = scalar_lea.vmem [#allocation5], %s239
        // Predicated region
        $region33: #{tpu_custom_call.1} parent=27 // pred_check
          %p241 = pneg %p101
        $region34: #{tpu_custom_call.1} parent=27 // pred_check_branch
          %243 = sbr.rel (%p241) target = $region36
        $region35: #{tpu_custom_call.1} parent=27 // pred_region
          %244 = dma.done %s237, 128
        $region36: #{tpu_custom_call.1} parent=27 // pred_fallthru
          _
        %s245 = sand.u32 %s58, 1
        %s246 = scalar_lea.sflag [#allocation3], %s245
        %s247 = sand.u32 %s58, 1
        %s248 = smul.addr %s247, 8
        %s249 = scalar_lea.vmem [#allocation2], %s248
        %p250 = pneg %p71
        %p251 = pneg %p68
        %s252 = sand.u32 %s88, 1
        %s253 = scalar_lea.sflag [#allocation6], %s252
        %s254 = sand.u32 %s88, 1
        %s255 = smul.addr %s254, 8
        %s256 = scalar_lea.vmem [#allocation5], %s255
        %p257 = pneg %p101
        %p258 = pneg %p98
        %p259 = pneg %p129
        %p260 = pneg %p126
        %s261 = sand.u32 %s116, 1
        %s262 = scalar_lea.sflag [#allocation4], %s261
        %s263 = sand.u32 %s116, 1
        %s264 = smul.addr %s263, 4
        %s265 = scalar_lea.vmem [#allocation7], %s264
        %p266 = pneg %p157
        %p267 = pneg %p154
        %s268 = sand.u32 %s144, 1
        %s269 = scalar_lea.sflag [#allocation9], %s268
        %s270 = sand.u32 %s144, 1
        %s271 = smul.addr %s270, 4
        %s272 = scalar_lea.vmem [#allocation8], %s271
        %s273 = sadd.s32 %s33, %s34
        %s274 = smul.u32 2, %s273
        %s275 = sadd.s32 %s33, %s34
        %s276 = smul.u32 2, %s275
        %p277 = scmp.eq.s32.totalorder %s34, 0
        // Predicated region
        $region37: #{tpu_custom_call.1} parent=27 // pred_check
          %p278 = pneg %p277
        $region38: #{tpu_custom_call.1} parent=27 // pred_check_branch
          %280 = sbr.rel (%p278) target = $region40
        $region39: #{tpu_custom_call.1} parent=27 // pred_region
          %281 = vst [vmem:[%s265] sm:$0xf] 0.0
          %282 = vst [vmem:[%s272] sm:$0xf] 0.0
        $region40: #{tpu_custom_call.1} parent=27 // pred_fallthru
          _
        %v283 = vld [vmem:[%s231] sm:$0xff]
        %v284 = vld [vmem:[%s240] sm:$0xff]
        %v286 = vcombine.high %v283, %v283
        %vm288 = vcmask 1043456
        %v289 = vsel %vm288, %v283, -inf
        %v290 = vrot.slane %v289, 4
        %v291 = vmax.f32 %v289, %v290
        %v292 = vrot.slane %v291, 2
        %v293 = vmax.f32 %v291, %v292
        %v294 = vrot.slane %v293, 1
        %v295 = vmax.f32 %v293, %v294
        %v296 = vsel %vm288, %v286, -inf
        %v297 = vrot.slane %v296, 4
        %v298 = vmax.f32 %v296, %v297
        %v299 = vrot.slane %v298, 2
        %v300 = vmax.f32 %v298, %v299
        %v301 = vrot.slane %v300, 1
        %v302 = vmax.f32 %v300, %v301
        %v305 = vcombine.low %v295, %v302
        %v307 = vsub.f32 %v283, %v305
        %v308 = vmul.f32 %v307, 1.442695
        %v309 = vpow.pop %v308
        %v311 = vcombine.high %v309, %v309
        %v313 = vsel %vm288, %v309, 0.0
        %v314 = vrot.slane %v313, 4
        %v315 = vadd.f32 %v313, %v314
        %v316 = vrot.slane %v315, 2
        %v317 = vadd.f32 %v315, %v316
        %v318 = vrot.slane %v317, 1
        %v319 = vadd.f32 %v317, %v318
        %v320 = vsel %vm288, %v311, 0.0
        %v321 = vrot.slane %v320, 4
        %v322 = vadd.f32 %v320, %v321
        %v323 = vrot.slane %v322, 2
        %v324 = vadd.f32 %v322, %v323
        %v325 = vrot.slane %v324, 1
        %v326 = vadd.f32 %v324, %v325
        %v327 = vrcp.pop %v319
        %v328 = vmul.f32 1.0, %v327
        %v329 = vrcp.pop %v326
        %v330 = vmul.f32 1.0, %v329
        %v333 = vcombine.low %v328, %v330
        %v335 = vmul.f32 %v309, %v333
        %v336 = vmul.f32 %v335, %v284
        %v337 = vadd.f32 %v335, %v284
        %v338 = vld [vmem:[%s265] sm:$0xf]
        %v340 = vrot.slane %v336, 4
        %v342 = vadd.f32 %v336, %v340
        %v343 = vadd.f32 %v338, %v342
        %344 = vst [vmem:[%s265] sm:$0xf] %v343
        %v345 = vld [vmem:[%s272] sm:$0xf]
        %v347 = vrot.slane %v337, 4
        %v349 = vadd.f32 %v337, %v347
        %v350 = vadd.f32 %v345, %v349
        %351 = vst [vmem:[%s272] sm:$0xf] %v350
        %s352 = sand.u32 %s116, 1
        %s353 = scalar_lea.sflag [#allocation4], %s352
        %s354 = sand.u32 %s116, 1
        %s355 = smul.addr %s354, 4
        %s356 = scalar_lea.vmem [#allocation7], %s355
        %s357 = sand.u32 %s144, 1
        %s358 = scalar_lea.sflag [#allocation9], %s357
        %s359 = sand.u32 %s144, 1
        %s360 = smul.addr %s359, 4
        %s361 = scalar_lea.vmem [#allocation8], %s360
        // Predicated region
        $region41: #{tpu_custom_call.1} parent=27 // pred_check
          %p362 = pneg %p126
        $region42: #{tpu_custom_call.1} parent=27 // pred_check_branch
          %364 = sbr.rel (%p362) target = $region44
        $region43: #{tpu_custom_call.1} parent=27 // pred_region
          %s366 = ssub.s32 64, 64
          %367 = vsyncadd %s353, %s366
          %s368 = sadd.s32 %s33, %s32
          %s369 = smul.addr %s368, 64
          %s370 = scalar_lea.hbm %s2, %s369
          %s372 = sshll.u32 %s356, 4
          %s373 = int_to_ptr.vmem [resolvable:$true] %s372
          %375 = dma.vmem_to_hbm [thread:$0]  %s373, 64, %s370, %s353
        $region44: #{tpu_custom_call.1} parent=27 // pred_fallthru
          _
        // Predicated region
        $region45: #{tpu_custom_call.1} parent=27 // pred_check
          %p376 = pneg %p154
        $region46: #{tpu_custom_call.1} parent=27 // pred_check_branch
          %378 = sbr.rel (%p376) target = $region48
        $region47: #{tpu_custom_call.1} parent=27 // pred_region
          %s380 = ssub.s32 64, 64
          %381 = vsyncadd %s358, %s380
          %s382 = sadd.s32 %s33, %s32
          %s383 = smul.addr %s382, 64
          %s384 = scalar_lea.hbm %s3, %s383
          %s386 = sshll.u32 %s361, 4
          %s387 = int_to_ptr.vmem [resolvable:$true] %s386
          %389 = dma.vmem_to_hbm [thread:$0]  %s387, 64, %s384, %s358
        $region48: #{tpu_custom_call.1} parent=27 // pred_fallthru
          _
      $region28: #{tpu_custom_call.1} parent=5 // pred_fallthru
        _
      %p390 = scmp.le.s32.totalorder 2, %s22
      // Predicated region
      $region49: #{tpu_custom_call.1} parent=5 // pred_check
        %p391 = pneg %p390
      $region50: #{tpu_custom_call.1} parent=5 // pred_check_branch
        %393 = sbr.rel (%p391) target = $region52
      $region51: #{tpu_custom_call.1} parent=5 // pred_region
        %s394 = ssub.s32 %s22, 2
        // Predicated region
        $region53: #{tpu_custom_call.1} parent=51 // pred_check
          %p395 = pneg %p132
        $region54: #{tpu_custom_call.1} parent=51 // pred_check_branch
          %397 = sbr.rel (%p395) target = $region56
        $region55: #{tpu_custom_call.1} parent=51 // pred_region
          %s398 = sand.u32 %s117, 1
          %s399 = scalar_lea.sflag [#allocation4], %s398
          %s400 = sand.u32 %s117, 1
          %s401 = smul.addr %s400, 4
          %s402 = scalar_lea.vmem [#allocation7], %s401
          %403 = dma.done %s399, 64
        $region56: #{tpu_custom_call.1} parent=51 // pred_fallthru
          _
        // Predicated region
        $region57: #{tpu_custom_call.1} parent=51 // pred_check
          %p404 = pneg %p160
        $region58: #{tpu_custom_call.1} parent=51 // pred_check_branch
          %406 = sbr.rel (%p404) target = $region60
        $region59: #{tpu_custom_call.1} parent=51 // pred_region
          %s407 = sand.u32 %s145, 1
          %s408 = scalar_lea.sflag [#allocation9], %s407
          %s409 = sand.u32 %s145, 1
          %s410 = smul.addr %s409, 4
          %s411 = scalar_lea.vmem [#allocation8], %s410
          %412 = dma.done %s408, 64
        $region60: #{tpu_custom_call.1} parent=51 // pred_fallthru
          _
      $region52: #{tpu_custom_call.1} parent=5 // pred_fallthru
        _
    $region6: #{tpu_custom_call.1} parent=1 // loop_footer
      %s26 = sadd.s32 1, %s22
    $region7: #{tpu_custom_call.1} parent=1 // loop_footer_branch
      %21 = sbr.rel target = $region3
    $region8: #{tpu_custom_call.1} parent=1 // loop_exit
      _
    %413 = vsyncpa [#allocation3], 1
    %s414 = scalar_lea.sflag [#allocation3], 1
    %415 = vsyncpa %s414, 1
    %416 = vsyncpa [#allocation6], 1
    %s417 = scalar_lea.sflag [#allocation6], 1
    %418 = vsyncpa %s417, 1
    %419 = vsyncpa [#allocation4], 1
    %s420 = scalar_lea.sflag [#allocation4], 1
    %421 = vsyncpa %s420, 1
    %422 = vsyncpa [#allocation9], 1
    %s423 = scalar_lea.sflag [#allocation9], 1
    %424 = vsyncpa %s423, 1

</llo_original>
